<compile_context>
chip_gen: v6e
topology: v6e:2x2x1
jax: 0.10.0
libtpu: 0.0.40
codegen_flags: <defaults>
</compile_context>

<pallas_src>
import functools

import jax
import jax.numpy as jnp
from jax.experimental import pallas as pl
from jax.experimental.pallas import tpu as pltpu


def critic_kernel(obs_ref, w1_ref, b1_ref, w2_ref, b2_ref, wl_ref, bl_ref,
                  out_ref, *, base_obs_dim):
    # obs tile: [Bt, obs_dim_total] f32. Static slice to the base observation.
    x = obs_ref[...][:, :base_obs_dim]                                   # [Bt, D]
    # Layer 1: bf16 MXU inputs, f32 accumulation, f32 bias + ReLU.
    h1 = jnp.dot(x.astype(jnp.bfloat16), w1_ref[...],
                 preferred_element_type=jnp.float32) + b1_ref[...]
    h1 = jnp.maximum(h1, 0.0)                                            # [Bt, H]
    # Layer 2.
    h2 = jnp.dot(h1.astype(jnp.bfloat16), w2_ref[...],
                 preferred_element_type=jnp.float32) + b2_ref[...]
    h2 = jnp.maximum(h2, 0.0)                                            # [Bt, F]
    # Value head (N=1): VPU multiply + lane reduction, keep f32 throughout.
    v = jnp.sum(h2 * wl_ref[...], axis=-1, keepdims=True) + bl_ref[...]  # [Bt, 1]
    out_ref[...] = v


def critic_forward(obs, params, base_obs_dim, *, block_b=128):
    """obs: [B, obs_dim_total] f32. Returns V(s): [B, 1] f32."""
    w1, b1, w2, b2, wl, bl = params
    B, d_total = obs.shape
    hidden = w1.shape[1]
    feat = w2.shape[1]

    # Cast only the MXU weight matrices to bf16 (once); biases / value-head
    # row stay f32 (VPU path).
    w1b = w1.astype(jnp.bfloat16)                       # [D, H]
    w2b = w2.astype(jnp.bfloat16)                       # [H, F]
    wl_row = wl.reshape(1, feat).astype(jnp.float32)    # [1, F]
    bl2 = bl.reshape(1, 1).astype(jnp.float32)          # [1, 1]

    # Pad batch to a tile boundary (Pallas VMEM tiles are not bounds-checked).
    num_tiles = pl.cdiv(B, block_b)
    b_pad = num_tiles * block_b
    if b_pad != B:
        obs = jnp.pad(obs, ((0, b_pad - B), (0, 0)))

    resident = lambda a: pl.BlockSpec(a.shape, lambda i: (0,) * a.ndim)

    out = pl.pallas_call(
        functools.partial(critic_kernel, base_obs_dim=base_obs_dim),
        out_shape=jax.ShapeDtypeStruct((b_pad, 1), jnp.float32),
        grid_spec=pltpu.PrefetchScalarGridSpec(
            num_scalar_prefetch=0,
            grid=(num_tiles,),
            in_specs=[
                pl.BlockSpec((block_b, d_total), lambda i: (i, 0)),  # obs tile
                resident(w1b), resident(b1),
                resident(w2b), resident(b2),
                resident(wl_row), resident(bl2),
            ],
            out_specs=pl.BlockSpec((block_b, 1), lambda i: (i, 0)),
        ),
        compiler_params=pltpu.CompilerParams(
            dimension_semantics=("parallel",)),
    )(obs, w1b, b1, w2b, b2, wl_row, bl2)

    return out[:B]


def init_params(key, base_obs_dim, hidden, feat_dim, last_size=1):
    ks = jax.random.split(key, 6)
    scale = lambda fan_in: 1.0 / jnp.sqrt(jnp.float32(fan_in))
    w1 = jax.random.uniform(ks[0], (base_obs_dim, hidden), jnp.float32, -1, 1) * scale(base_obs_dim)
    b1 = jax.random.uniform(ks[1], (1, hidden), jnp.float32, -1, 1) * scale(base_obs_dim)
    w2 = jax.random.uniform(ks[2], (hidden, feat_dim), jnp.float32, -1, 1) * scale(hidden)
    b2 = jax.random.uniform(ks[3], (1, feat_dim), jnp.float32, -1, 1) * scale(hidden)
    wl = jax.random.uniform(ks[4], (feat_dim, last_size), jnp.float32, -1, 1) * scale(feat_dim)
    bl = jax.random.uniform(ks[5], (1, last_size), jnp.float32, -1, 1) * scale(feat_dim)
    return (w1, b1, w2, b2, wl, bl)


def critic_ref(obs, params, base_obs_dim):
    # Pure-JAX f32 reference for correctness check.
    obs = obs[:, :base_obs_dim]
    w1, b1, w2, b2, wl, bl = params
    h1 = jnp.maximum(obs @ w1 + b1, 0.0)
    h2 = jnp.maximum(h1 @ w2 + b2, 0.0)
    return h2 @ wl + bl


if __name__ == "__main__":
    # Shapes consistent with the module: obs [B, obs_dim_total] sliced to
    # base_obs_dim, 2-layer ReLU preprocess MLP, 1-wide value head.
    # B is intentionally not a multiple of the batch tile to exercise padding.
    B = 200
    obs_dim_total = 40
    base_obs_dim = 32          # algo_config.base_obs_dim (synthetic)
    hidden = 128               # preprocess_net hidden width
    feat_dim = 128             # preprocess_net.output_dim
    last_size = 1
    block_b = 128              # batch tile; sweep {128, 256, 512} for large B

    key = jax.random.PRNGKey(0)
    k_obs, k_par = jax.random.split(key)
    obs = jax.random.normal(k_obs, (B, obs_dim_total), jnp.float32)
    params = init_params(k_par, base_obs_dim, hidden, feat_dim, last_size)

    v = critic_forward(obs, params, base_obs_dim, block_b=block_b)
    v = jax.block_until_ready(v)

    v_ref = critic_ref(obs, params, base_obs_dim)
    assert v.shape == (B, last_size)
    # bf16 MXU inputs with f32 accumulation -> loosen tolerance vs f32 ref.
    assert jnp.allclose(v, v_ref, atol=3e-2, rtol=3e-2), float(
        jnp.max(jnp.abs(v - v_ref)))

    print("KERNEL_OK")
</pallas_src>

<mosaic_0001>
module attributes {stable_mosaic.version = 11 : i64} {
  func.func @critic_kernel(%arg0: i32, %arg1: memref<128x40xf32, #tpu.memory_space<vmem>>, %arg2: memref<32x128xbf16, #tpu.memory_space<vmem>>, %arg3: memref<1x128xf32, #tpu.memory_space<vmem>>, %arg4: memref<128x128xbf16, #tpu.memory_space<vmem>>, %arg5: memref<1x128xf32, #tpu.memory_space<vmem>>, %arg6: memref<1x128xf32, #tpu.memory_space<vmem>>, %arg7: memref<1x1xf32, #tpu.memory_space<vmem>>, %arg8: memref<128x1xf32, #tpu.memory_space<vmem>>) attributes {dimension_semantics = [#tpu.dimension_semantics<parallel>], iteration_bounds = array<i64: 2>, scalar_prefetch = 0 : i64, scratch_operands = 0 : i64, tpu.core_type = #tpu.core_type<tc>, window_params = [{transform_indices = @transform_0, window_bounds = array<i64: 128, 40>}, {pipeline_mode = #tpu.pipeline_mode<synchronous>, transform_indices = @transform_1, window_bounds = array<i64: 32, 128>}, {pipeline_mode = #tpu.pipeline_mode<synchronous>, transform_indices = @transform_2, window_bounds = array<i64: 1, 128>}, {pipeline_mode = #tpu.pipeline_mode<synchronous>, transform_indices = @transform_3, window_bounds = array<i64: 128, 128>}, {pipeline_mode = #tpu.pipeline_mode<synchronous>, transform_indices = @transform_4, window_bounds = array<i64: 1, 128>}, {pipeline_mode = #tpu.pipeline_mode<synchronous>, transform_indices = @transform_5, window_bounds = array<i64: 1, 128>}, {pipeline_mode = #tpu.pipeline_mode<synchronous>, transform_indices = @transform_6, window_bounds = array<i64: 1, 1>}, {transform_indices = @transform_7, window_bounds = array<i64: 128, 1>}]} {
    %c0 = arith.constant 0 : index
    %c0_0 = arith.constant 0 : index
    %0 = vector.load %arg1[%c0, %c0_0] : memref<128x40xf32, #tpu.memory_space<vmem>>, vector<128x40xf32>
    %1 = vector.extract_strided_slice %0 {offsets = [0, 0], sizes = [128, 32], strides = [1, 1]} : vector<128x40xf32> to vector<128x32xf32>
    %2 = arith.truncf %1 : vector<128x32xf32> to vector<128x32xbf16>
    %c0_1 = arith.constant 0 : index
    %c0_2 = arith.constant 0 : index
    %3 = vector.load %arg2[%c0_1, %c0_2] : memref<32x128xbf16, #tpu.memory_space<vmem>>, vector<32x128xbf16>
    %cst = arith.constant dense<0.000000e+00> : vector<128x128xf32>
    %4 = tpu.matmul %2, %3, %cst {dimension_numbers = #tpu.dot_dimension_numbers<[1], [0], [0], [1], [0, 0, 1, 1], [], []>} : vector<128x32xbf16>, vector<32x128xbf16>, vector<128x128xf32> -> vector<128x128xf32>
    %c0_3 = arith.constant 0 : index
    %c0_4 = arith.constant 0 : index
    %5 = vector.load %arg3[%c0_3, %c0_4] : memref<1x128xf32, #tpu.memory_space<vmem>>, vector<1x128xf32>
    %6 = vector.broadcast %5 : vector<1x128xf32> to vector<128x128xf32>
    %7 = arith.addf %4, %6 : vector<128x128xf32>
    %cst_5 = arith.constant 0.000000e+00 : f32
    %8 = vector.broadcast %cst_5 : f32 to vector<128x128xf32>
    %9 = arith.maximumf %7, %8 : vector<128x128xf32>
    %10 = arith.truncf %9 : vector<128x128xf32> to vector<128x128xbf16>
    %c0_6 = arith.constant 0 : index
    %c0_7 = arith.constant 0 : index
    %11 = vector.load %arg4[%c0_6, %c0_7] : memref<128x128xbf16, #tpu.memory_space<vmem>>, vector<128x128xbf16>
    %cst_8 = arith.constant dense<0.000000e+00> : vector<128x128xf32>
    %12 = tpu.matmul %10, %11, %cst_8 {dimension_numbers = #tpu.dot_dimension_numbers<[1], [0], [0], [1], [0, 0, 1, 1], [], []>} : vector<128x128xbf16>, vector<128x128xbf16>, vector<128x128xf32> -> vector<128x128xf32>
    %c0_9 = arith.constant 0 : index
    %c0_10 = arith.constant 0 : index
    %13 = vector.load %arg5[%c0_9, %c0_10] : memref<1x128xf32, #tpu.memory_space<vmem>>, vector<1x128xf32>
    %14 = vector.broadcast %13 : vector<1x128xf32> to vector<128x128xf32>
    %15 = arith.addf %12, %14 : vector<128x128xf32>
    %cst_11 = arith.constant 0.000000e+00 : f32
    %16 = vector.broadcast %cst_11 : f32 to vector<128x128xf32>
    %17 = arith.maximumf %15, %16 : vector<128x128xf32>
    %c0_12 = arith.constant 0 : index
    %c0_13 = arith.constant 0 : index
    %18 = vector.load %arg6[%c0_12, %c0_13] : memref<1x128xf32, #tpu.memory_space<vmem>>, vector<1x128xf32>
    %19 = vector.broadcast %18 : vector<1x128xf32> to vector<128x128xf32>
    %20 = arith.mulf %17, %19 : vector<128x128xf32>
    %cst_14 = arith.constant dense<0.000000e+00> : vector<128xf32>
    %21 = vector.multi_reduction <add>, %20, %cst_14 [1] : vector<128x128xf32> to vector<128xf32>
    %22 = vector.shape_cast %21 : vector<128xf32> to vector<128x1xf32>
    %c0_15 = arith.constant 0 : index
    %c0_16 = arith.constant 0 : index
    %23 = vector.load %arg7[%c0_15, %c0_16] : memref<1x1xf32, #tpu.memory_space<vmem>>, vector<1x1xf32>
    %24 = vector.broadcast %23 : vector<1x1xf32> to vector<128x1xf32>
    %25 = arith.addf %22, %24 : vector<128x1xf32>
    %c0_17 = arith.constant 0 : index
    %c0_18 = arith.constant 0 : index
    %26 = vector.load %arg8[%c0_17, %c0_18] : memref<128x1xf32, #tpu.memory_space<vmem>>, vector<128x1xf32>
    tpu.vector_store %arg8[%c0_17, %c0_18], %25 {strides = array<i32>} : memref<128x1xf32, #tpu.memory_space<vmem>>, vector<128x1xf32>,
    return
  }
  func.func @transform_0(%arg0: i32) -> (i32, i32) {
    %c0_i32 = arith.constant 0 : i32
    %c0_i32_0 = arith.constant 0 : i32
    return %arg0, %c0_i32 : i32, i32
  }
  func.func @transform_1(%arg0: i32) -> (i32, i32) {
    %c0_i32 = arith.constant 0 : i32
    %c0_i32_0 = arith.constant 0 : i32
    %c0_i32_1 = arith.constant 0 : i32
    return %c0_i32, %c0_i32_0 : i32, i32
  }
  func.func @transform_2(%arg0: i32) -> (i32, i32) {
    %c0_i32 = arith.constant 0 : i32
    %c0_i32_0 = arith.constant 0 : i32
    %c0_i32_1 = arith.constant 0 : i32
    return %c0_i32, %c0_i32_0 : i32, i32
  }
  func.func @transform_3(%arg0: i32) -> (i32, i32) {
    %c0_i32 = arith.constant 0 : i32
    %c0_i32_0 = arith.constant 0 : i32
    %c0_i32_1 = arith.constant 0 : i32
    return %c0_i32, %c0_i32_0 : i32, i32
  }
  func.func @transform_4(%arg0: i32) -> (i32, i32) {
    %c0_i32 = arith.constant 0 : i32
    %c0_i32_0 = arith.constant 0 : i32
    %c0_i32_1 = arith.constant 0 : i32
    return %c0_i32, %c0_i32_0 : i32, i32
  }
  func.func @transform_5(%arg0: i32) -> (i32, i32) {
    %c0_i32 = arith.constant 0 : i32
    %c0_i32_0 = arith.constant 0 : i32
    %c0_i32_1 = arith.constant 0 : i32
    return %c0_i32, %c0_i32_0 : i32, i32
  }
  func.func @transform_6(%arg0: i32) -> (i32, i32) {
    %c0_i32 = arith.constant 0 : i32
    %c0_i32_0 = arith.constant 0 : i32
    %c0_i32_1 = arith.constant 0 : i32
    return %c0_i32, %c0_i32_0 : i32, i32
  }
  func.func @transform_7(%arg0: i32) -> (i32, i32) {
    %c0_i32 = arith.constant 0 : i32
    %c0_i32_0 = arith.constant 0 : i32
    return %arg0, %c0_i32 : i32, i32
  }
}

</mosaic_0001>

<llo_original>
// kernel: tpu_custom_call.1
$region0: #{tpu_custom_call.1}
  #allocation0 [shape = 'u32[]', space=smem, size = 0x4, offset = 0x4, fixed_abs, tag = 'smem constant byte address 0x4 - core index']
  #allocation1 [shape = 'u32[144,128]{1,0:T(1,128)}', space=vmem, size = 0x12000, scoped, tag = 'internal scratch']
  #allocation2 [shape = 'f32[1,1]{1,0:T(1,128)S(1)}', space=vmem, size = 0x200, scoped, tag = 'scoped memory for tpu_custom_call.1']
  %s0 = inlined_call_operand.vmem [shape: f32[256,40], index: 0, kind: input, shape index: {}]
  %s1 = inlined_call_operand.vmem [shape: bf16[32,128], index: 1, kind: input, shape index: {}]
  %s2 = inlined_call_operand.vmem [shape: f32[1,128], index: 2, kind: input, shape index: {}]
  %s3 = inlined_call_operand.vmem [shape: bf16[128,128], index: 3, kind: input, shape index: {}]
  %s4 = inlined_call_operand.vmem [shape: f32[1,128], index: 4, kind: input, shape index: {}]
  %s5 = inlined_call_operand.vmem [shape: f32[1,128], index: 5, kind: input, shape index: {}]
  %s6 = inlined_call_operand.<no memory space> [shape: f32[1,1], index: 6, kind: input, shape index: {}]
  %s7 = inlined_call_operand.vmem [shape: f32[256,1], index: 7, kind: output, shape index: {}]
  %s8 = sld [smem:[#allocation0]]
  $region61: #{tpu_custom_call.1} parent=0
    _
  %s10 = ssub.s32 1, %s8
  %s11 = scalar_select 0, %s10, %s8
  %v12 = vstv %s6
  %13 = vst [vmem:[#allocation2] sm:$0x1] %v12
  loop: start=0, step=1, limit=4
  $region2: #{tpu_custom_call.1} parent=0 // loop_pre_header
    _
  $region3: #{tpu_custom_call.1} parent=0 // loop_header
    %s15 = sphi 0, %s19
    %p16 = scmp.ge.s32.totalorder %s15, 4
    %s25 = sphi 0, %s27
    %s28 = sphi 0, %s25
    %s29 = sphi 0, %s28
    %s45 = sphi 0, %s29
    %s49 = sphi 0, %s49
    %s51 = sphi 0, %s49
    %s52 = sphi 0, %s51
    %s66 = sphi 0, %s52
    %s70 = sphi 0, %s70
    %s72 = sphi 0, %s70
    %s73 = sphi 0, %s72
    %s87 = sphi 0, %s73
    %s91 = sphi 0, %s91
    %s93 = sphi 0, %s91
    %s94 = sphi 0, %s93
    %s108 = sphi 0, %s94
    %s112 = sphi 0, %s112
    %s114 = sphi 0, %s112
    %s115 = sphi 0, %s114
    %s129 = sphi 0, %s115
    %s133 = sphi 0, %s133
    %s135 = sphi 0, %s133
    %s136 = sphi 0, %s135
    %s150 = sphi 0, %s136
    %s154 = sphi 0, %s154
    %s156 = sphi 0, %s154
    %s157 = sphi 0, %s156
    %s171 = sphi 0, %s157
    %s177 = sphi 0, %s179
    %s180 = sphi 0, %s177
    %s181 = sphi 0, %s180
    %s197 = sphi 0, %s181
  $region4: #{tpu_custom_call.1} parent=0 // loop_header_branch
    %18 = sbr.rel (%p16) target = $region8
  $region5: #{tpu_custom_call.1} parent=0 // loop_body
    %s20 = ssub.s32 %s15, 1
    %s21 = ssub.s32 %s15, 2
    %s22 = sadd.s32 %s15, 1
    %s23 = ssub.s32 %s15, %s22
    %p24 = scmp.eq.s32.totalorder %s23, 0
    %s26 = sadd.s32 %s25, 1
    %s27 = scalar_select %p24, %s25, %s26
    %p30 = pneg %p24
    %p31 = scmp.eq.s32.totalorder %s15, 1
    %p32 = por %p30, %p31
    %p33 = scmp.ne.s32.totalorder %s25, %s28
    %p34 = scmp.eq.s32.totalorder %s15, 0
    %p35 = por %p33, %p34
    %p36 = scmp.ne.s32.totalorder %s25, %s28
    %p37 = scmp.eq.s32.totalorder %s20, 1
    %p38 = por %p36, %p37
    %p39 = scmp.ne.s32.totalorder %s28, %s29
    %p40 = scmp.eq.s32.totalorder %s20, 0
    %p41 = por %p39, %p40
    %p42 = scmp.ne.s32.totalorder %s28, %s29
    %p43 = scmp.eq.s32.totalorder %s21, 1
    %p44 = por %p42, %p43
    %p46 = scmp.ne.s32.totalorder %s29, %s45
    %p47 = scmp.eq.s32.totalorder %s21, 0
    %p48 = por %p46, %p47
    %s50 = sadd.s32 %s49, 1
    %p53 = scmp.eq.s32.totalorder %s15, 1
    %p54 = scmp.ne.s32.totalorder %s49, %s51
    %p55 = scmp.eq.s32.totalorder %s15, 0
    %p56 = por %p54, %p55
    %p57 = scmp.ne.s32.totalorder %s49, %s51
    %p58 = scmp.eq.s32.totalorder %s20, 1
    %p59 = por %p57, %p58
    %p60 = scmp.ne.s32.totalorder %s51, %s52
    %p61 = scmp.eq.s32.totalorder %s20, 0
    %p62 = por %p60, %p61
    %p63 = scmp.ne.s32.totalorder %s51, %s52
    %p64 = scmp.eq.s32.totalorder %s21, 1
    %p65 = por %p63, %p64
    %p67 = scmp.ne.s32.totalorder %s52, %s66
    %p68 = scmp.eq.s32.totalorder %s21, 0
    %p69 = por %p67, %p68
    %s71 = sadd.s32 %s70, 1
    %p74 = scmp.eq.s32.totalorder %s15, 1
    %p75 = scmp.ne.s32.totalorder %s70, %s72
    %p76 = scmp.eq.s32.totalorder %s15, 0
    %p77 = por %p75, %p76
    %p78 = scmp.ne.s32.totalorder %s70, %s72
    %p79 = scmp.eq.s32.totalorder %s20, 1
    %p80 = por %p78, %p79
    %p81 = scmp.ne.s32.totalorder %s72, %s73
    %p82 = scmp.eq.s32.totalorder %s20, 0
    %p83 = por %p81, %p82
    %p84 = scmp.ne.s32.totalorder %s72, %s73
    %p85 = scmp.eq.s32.totalorder %s21, 1
    %p86 = por %p84, %p85
    %p88 = scmp.ne.s32.totalorder %s73, %s87
    %p89 = scmp.eq.s32.totalorder %s21, 0
    %p90 = por %p88, %p89
    %s92 = sadd.s32 %s91, 1
    %p95 = scmp.eq.s32.totalorder %s15, 1
    %p96 = scmp.ne.s32.totalorder %s91, %s93
    %p97 = scmp.eq.s32.totalorder %s15, 0
    %p98 = por %p96, %p97
    %p99 = scmp.ne.s32.totalorder %s91, %s93
    %p100 = scmp.eq.s32.totalorder %s20, 1
    %p101 = por %p99, %p100
    %p102 = scmp.ne.s32.totalorder %s93, %s94
    %p103 = scmp.eq.s32.totalorder %s20, 0
    %p104 = por %p102, %p103
    %p105 = scmp.ne.s32.totalorder %s93, %s94
    %p106 = scmp.eq.s32.totalorder %s21, 1
    %p107 = por %p105, %p106
    %p109 = scmp.ne.s32.totalorder %s94, %s108
    %p110 = scmp.eq.s32.totalorder %s21, 0
    %p111 = por %p109, %p110
    %s113 = sadd.s32 %s112, 1
    %p116 = scmp.eq.s32.totalorder %s15, 1
    %p117 = scmp.ne.s32.totalorder %s112, %s114
    %p118 = scmp.eq.s32.totalorder %s15, 0
    %p119 = por %p117, %p118
    %p120 = scmp.ne.s32.totalorder %s112, %s114
    %p121 = scmp.eq.s32.totalorder %s20, 1
    %p122 = por %p120, %p121
    %p123 = scmp.ne.s32.totalorder %s114, %s115
    %p124 = scmp.eq.s32.totalorder %s20, 0
    %p125 = por %p123, %p124
    %p126 = scmp.ne.s32.totalorder %s114, %s115
    %p127 = scmp.eq.s32.totalorder %s21, 1
    %p128 = por %p126, %p127
    %p130 = scmp.ne.s32.totalorder %s115, %s129
    %p131 = scmp.eq.s32.totalorder %s21, 0
    %p132 = por %p130, %p131
    %s134 = sadd.s32 %s133, 1
    %p137 = scmp.eq.s32.totalorder %s15, 1
    %p138 = scmp.ne.s32.totalorder %s133, %s135
    %p139 = scmp.eq.s32.totalorder %s15, 0
    %p140 = por %p138, %p139
    %p141 = scmp.ne.s32.totalorder %s133, %s135
    %p142 = scmp.eq.s32.totalorder %s20, 1
    %p143 = por %p141, %p142
    %p144 = scmp.ne.s32.totalorder %s135, %s136
    %p145 = scmp.eq.s32.totalorder %s20, 0
    %p146 = por %p144, %p145
    %p147 = scmp.ne.s32.totalorder %s135, %s136
    %p148 = scmp.eq.s32.totalorder %s21, 1
    %p149 = por %p147, %p148
    %p151 = scmp.ne.s32.totalorder %s136, %s150
    %p152 = scmp.eq.s32.totalorder %s21, 0
    %p153 = por %p151, %p152
    %s155 = sadd.s32 %s154, 1
    %p158 = scmp.eq.s32.totalorder %s15, 1
    %p159 = scmp.ne.s32.totalorder %s154, %s156
    %p160 = scmp.eq.s32.totalorder %s15, 0
    %p161 = por %p159, %p160
    %p162 = scmp.ne.s32.totalorder %s154, %s156
    %p163 = scmp.eq.s32.totalorder %s20, 1
    %p164 = por %p162, %p163
    %p165 = scmp.ne.s32.totalorder %s156, %s157
    %p166 = scmp.eq.s32.totalorder %s20, 0
    %p167 = por %p165, %p166
    %p168 = scmp.ne.s32.totalorder %s156, %s157
    %p169 = scmp.eq.s32.totalorder %s21, 1
    %p170 = por %p168, %p169
    %p172 = scmp.ne.s32.totalorder %s157, %s171
    %p173 = scmp.eq.s32.totalorder %s21, 0
    %p174 = por %p172, %p173
    %s175 = ssub.s32 %s15, %s22
    %p176 = scmp.eq.s32.totalorder %s175, 0
    %s178 = sadd.s32 %s177, 1
    %s179 = scalar_select %p176, %s177, %s178
    %p182 = pneg %p176
    %p183 = scmp.eq.s32.totalorder %s15, 1
    %p184 = por %p182, %p183
    %p185 = scmp.ne.s32.totalorder %s177, %s180
    %p186 = scmp.eq.s32.totalorder %s15, 0
    %p187 = por %p185, %p186
    %p188 = scmp.ne.s32.totalorder %s177, %s180
    %p189 = scmp.eq.s32.totalorder %s20, 1
    %p190 = por %p188, %p189
    %p191 = scmp.ne.s32.totalorder %s180, %s181
    %p192 = scmp.eq.s32.totalorder %s20, 0
    %p193 = por %p191, %p192
    %p194 = scmp.ne.s32.totalorder %s180, %s181
    %p195 = scmp.eq.s32.totalorder %s21, 1
    %p196 = por %p194, %p195
    %p198 = scmp.ne.s32.totalorder %s181, %s197
    %p199 = scmp.eq.s32.totalorder %s21, 0
    %p200 = por %p198, %p199
    %p201 = scmp.le.s32.totalorder 1, %s15
    %p202 = scmp.lt.s32.totalorder %s15, 3
    %p203 = pnand %p201, %p202
    %p204 = pneg %p203
    // Predicated region
    $region9: #{tpu_custom_call.1} parent=5 // pred_check
      _
    $region10: #{tpu_custom_call.1} parent=5 // pred_check_branch
      %206 = sbr.rel (%p203) target = $region12
    $region11: #{tpu_custom_call.1} parent=5 // pred_region
      %s207 = ssub.s32 %s15, 1
      // Predicated region
      $region13: #{tpu_custom_call.1} parent=11 // pred_check
        %p208 = pneg %p62
      $region14: #{tpu_custom_call.1} parent=11 // pred_check_branch
        %210 = sbr.rel (%p208) target = $region16
      $region15: #{tpu_custom_call.1} parent=11 // pred_region
        _
      $region16: #{tpu_custom_call.1} parent=11 // pred_fallthru
        _
      // Predicated region
      $region17: #{tpu_custom_call.1} parent=11 // pred_check
        %p211 = pneg %p83
      $region18: #{tpu_custom_call.1} parent=11 // pred_check_branch
        %213 = sbr.rel (%p211) target = $region20
      $region19: #{tpu_custom_call.1} parent=11 // pred_region
        _
      $region20: #{tpu_custom_call.1} parent=11 // pred_fallthru
        _
      // Predicated region
      $region21: #{tpu_custom_call.1} parent=11 // pred_check
        %p214 = pneg %p104
      $region22: #{tpu_custom_call.1} parent=11 // pred_check_branch
        %216 = sbr.rel (%p214) target = $region24
      $region23: #{tpu_custom_call.1} parent=11 // pred_region
        _
      $region24: #{tpu_custom_call.1} parent=11 // pred_fallthru
        _
      // Predicated region
      $region25: #{tpu_custom_call.1} parent=11 // pred_check
        %p217 = pneg %p125
      $region26: #{tpu_custom_call.1} parent=11 // pred_check_branch
        %219 = sbr.rel (%p217) target = $region28
      $region27: #{tpu_custom_call.1} parent=11 // pred_region
        _
      $region28: #{tpu_custom_call.1} parent=11 // pred_fallthru
        _
      // Predicated region
      $region29: #{tpu_custom_call.1} parent=11 // pred_check
        %p220 = pneg %p146
      $region30: #{tpu_custom_call.1} parent=11 // pred_check_branch
        %222 = sbr.rel (%p220) target = $region32
      $region31: #{tpu_custom_call.1} parent=11 // pred_region
        _
      $region32: #{tpu_custom_call.1} parent=11 // pred_fallthru
        _
      // Predicated region
      $region33: #{tpu_custom_call.1} parent=11 // pred_check
        %p223 = pneg %p167
      $region34: #{tpu_custom_call.1} parent=11 // pred_check_branch
        %225 = sbr.rel (%p223) target = $region36
      $region35: #{tpu_custom_call.1} parent=11 // pred_region
        _
      $region36: #{tpu_custom_call.1} parent=11 // pred_fallthru
        _
    $region12: #{tpu_custom_call.1} parent=5 // pred_fallthru
      _
    %p226 = scmp.lt.s32.totalorder %s15, 2
    // Predicated region
    $region37: #{tpu_custom_call.1} parent=5 // pred_check
      %p227 = pneg %p226
    $region38: #{tpu_custom_call.1} parent=5 // pred_check_branch
      %229 = sbr.rel (%p227) target = $region40
    $region39: #{tpu_custom_call.1} parent=5 // pred_region
      // Predicated region
      $region41: #{tpu_custom_call.1} parent=39 // pred_check
        %p230 = pneg %p35
      $region42: #{tpu_custom_call.1} parent=39 // pred_check_branch
        %232 = sbr.rel (%p230) target = $region44
      $region43: #{tpu_custom_call.1} parent=39 // pred_region
        %s233 = smul.u32 16, %s15
        %p234 = scmp.lt.s32.totalorder %s233, 31
        %s235 = scalar_select %p234, %s233, 31
        %s236 = smul.addr %s235, 8
        %s237 = scalar_lea.vmem %s0, %s236
        %s238 = smul.u32 16, %s15
      $region44: #{tpu_custom_call.1} parent=39 // pred_fallthru
        _
    $region40: #{tpu_custom_call.1} parent=5 // pred_fallthru
      _
    %p239 = scmp.le.s32.totalorder 1, %s15
    %p240 = scmp.lt.s32.totalorder %s15, 3
    %p241 = pnand %p239, %p240
    %p242 = pneg %p241
    // Predicated region
    $region45: #{tpu_custom_call.1} parent=5 // pred_check
      _
    $region46: #{tpu_custom_call.1} parent=5 // pred_check_branch
      %244 = sbr.rel (%p241) target = $region48
    $region47: #{tpu_custom_call.1} parent=5 // pred_region
      %s245 = ssub.s32 %s15, 1
      %s246 = smul.u32 16, %s20
      %p247 = scmp.lt.s32.totalorder %s246, 31
      %s248 = scalar_select %p247, %s246, 31
      %s249 = smul.addr %s248, 8
      %s250 = scalar_lea.vmem %s0, %s249
      %p251 = pneg %p41
      %p252 = pneg %p38
      %p253 = pneg %p62
      %p254 = pneg %p59
      %p255 = pneg %p83
      %p256 = pneg %p80
      %p257 = pneg %p104
      %p258 = pneg %p101
      %p259 = pneg %p125
      %p260 = pneg %p122
      %p261 = pneg %p146
      %p262 = pneg %p143
      %p263 = pneg %p167
      %p264 = pneg %p164
      %p265 = pneg %p193
      %p266 = pneg %p190
      %s267 = smul.u32 16, %s20
      %p268 = scmp.lt.s32.totalorder %s267, 31
      %s269 = scalar_select %p268, %s267, 31
      %s270 = smul.addr %s269, 8
      %s271 = scalar_lea.vmem %s7, %s270
      %s272 = smul.u32 16, %s20
      %p273 = scmp.lt.s32.totalorder %s272, 31
      %s274 = scalar_select %p273, %s272, 31
      %s275 = smul.addr %s274, 8
      %s276 = scalar_lea.vmem %s0, %s275
      %s277 = smul.u32 16, %s20
      %s278 = smul.u32 16, %s20
      %p279 = scmp.lt.s32.totalorder %s278, 31
      %s280 = scalar_select %p279, %s278, 31
      %s281 = smul.addr %s280, 8
      %s282 = scalar_lea.vmem %s7, %s281
      %s283 = smul.u32 16, %s20
      %v285 = vld [vmem:[%s276] sm:$0xff]
      %v286 = vld [vmem:[%s276 + $0x8] sm:$0xff]
      %v287 = vld [vmem:[%s276 + $0x10] sm:$0xff]
      %v288 = vld [vmem:[%s276 + $0x18] sm:$0xff]
      %v289 = vld [vmem:[%s276 + $0x20] sm:$0xff]
      %v290 = vld [vmem:[%s276 + $0x28] sm:$0xff]
      %v291 = vld [vmem:[%s276 + $0x30] sm:$0xff]
      %v292 = vld [vmem:[%s276 + $0x38] sm:$0xff]
      %v293 = vld [vmem:[%s276 + $0x40] sm:$0xff]
      %v294 = vld [vmem:[%s276 + $0x48] sm:$0xff]
      %v295 = vld [vmem:[%s276 + $0x50] sm:$0xff]
      %v296 = vld [vmem:[%s276 + $0x58] sm:$0xff]
      %v297 = vld [vmem:[%s276 + $0x60] sm:$0xff]
      %v298 = vld [vmem:[%s276 + $0x68] sm:$0xff]
      %v299 = vld [vmem:[%s276 + $0x70] sm:$0xff]
      %v300 = vld [vmem:[%s276 + $0x78] sm:$0xff]
      %v301 = vpack.c.bf16 %v286, %v285
      %v302 = vpack.c.bf16 %v288, %v287
      %v303 = vpack.c.bf16 %v290, %v289
      %v304 = vpack.c.bf16 %v292, %v291
      %v305 = vpack.c.bf16 %v294, %v293
      %v306 = vpack.c.bf16 %v296, %v295
      %v307 = vpack.c.bf16 %v298, %v297
      %v308 = vpack.c.bf16 %v300, %v299
      %v309 = vld [vmem:[%s1] sm:$0xf]
      %v310 = vld [vmem:[%s1 + $0x4] sm:$0xf]
      %v311 = vld [vmem:[%s1 + $0x8] sm:$0xf]
      %v312 = vld [vmem:[%s1 + $0xc] sm:$0xf]
      %v313 = vld [vmem:[%s2] sm:$0x1]
      %v315 = vlaneseq
      %v316 = vshrl.u32 %v315, 7
      %v317 = vsub.s32 0, %v316
      %v318 = vrot.slane %v313, %v317
      %v324 = vunpack.c.l.b16 %v309
      %v325 = vunpack.c.l.b16 %v310
      %v326 = vunpack.c.l.b16 %v311
      %v327 = vunpack.c.l.b16 %v312
      %v328 = vpack.c.b16 %v325, %v324
      %v329 = vpack.c.b16 %v327, %v326
      %vm332 = vcmask 261120
      %v334 = vsel %vm332, %v301, 0
      %v337 = vsel %vm332, %v302, 0
      %v340 = vsel %vm332, %v303, 0
      %v343 = vsel %vm332, %v304, 0
      %v346 = vsel %vm332, %v305, 0
      %v349 = vsel %vm332, %v306, 0
      %v352 = vsel %vm332, %v307, 0
      %v355 = vsel %vm332, %v308, 0
      %357 = vmatprep.subr.bf16.mxu0 0
      %358 = vmatpush1.bf16.msra.mxu0 0
      %359 = vmatprep.subr.bf16.mxu0 0
      %360 = vmatpush1.bf16.msra.mxu0 0
      %361 = vmatprep.subr.bf16.mxu0 0
      %362 = vmatpush1.bf16.msra.mxu0 0
      %363 = vmatprep.subr.bf16.mxu0 0
      %364 = vmatpush1.bf16.msra.mxu0 0
      %365 = vmatprep.subr.bf16.mxu0 0
      %366 = vmatpush1.bf16.msra.mxu0 0
      %367 = vmatprep.subr.bf16.mxu0 0
      %368 = vmatpush1.bf16.msra.mxu0 0
      %369 = vmatprep.subr.bf16.mxu0 0
      %370 = vmatpush1.bf16.msra.mxu0 %v329
      %371 = vmatprep.subr.bf16.mxu0 0
      %372 = vmatpush1.bf16.msra.mxu0 %v328
      %373 = vmatprep.subr.bf16.mxu0 0
      %374 = vmatpush2.bf16.msra.mxu0 0
      %375 = vmatprep.subr.bf16.mxu0 0
      %376 = vmatpush2.bf16.msra.mxu0 0
      %377 = vmatprep.subr.bf16.mxu0 0
      %378 = vmatpush2.bf16.msra.mxu0 0
      %379 = vmatprep.subr.bf16.mxu0 0
      %380 = vmatpush2.bf16.msra.mxu0 0
      %381 = vmatprep.subr.bf16.mxu0 0
      %382 = vmatpush2.bf16.msra.mxu0 0
      %383 = vmatprep.subr.bf16.mxu0 0
      %384 = vmatpush2.bf16.msra.mxu0 0
      %385 = vmatprep.subr.bf16.mxu0 0
      %386 = vmatpush2.bf16.msra.mxu0 0
      %387 = vmatprep.subr.bf16.mxu0 0
      %388 = vmatpush2.bf16.msra.mxu0 0
      %389 = vmatprep.mubr.bf16.mxu0 0
      %390 = vmatmul.mubr.bf16.gmra.mxu0 %v334
      %v391 = vpop.f32.mrf.mxu0
      %v392 = vadd.f32 %v318, %v391
      %v393 = vpop.f32.mrf.mxu0
      %v394 = vpop.f32.mrf.mxu0
      %v395 = vadd.f32 %v318, %v394
      %v396 = vpop.f32.mrf.mxu0
      %397 = vmatprep.mubr.bf16.mxu0 0
      %398 = vmatmul.mubr.bf16.gmra.mxu0 %v337
      %v399 = vpop.f32.mrf.mxu0
      %v400 = vadd.f32 %v318, %v399
      %v401 = vpop.f32.mrf.mxu0
      %v402 = vpop.f32.mrf.mxu0
      %v403 = vadd.f32 %v318, %v402
      %v404 = vpop.f32.mrf.mxu0
      %405 = vmatprep.mubr.bf16.mxu0 0
      %406 = vmatmul.mubr.bf16.gmra.mxu0 %v340
      %v407 = vpop.f32.mrf.mxu0
      %v408 = vadd.f32 %v318, %v407
      %v409 = vpop.f32.mrf.mxu0
      %v410 = vpop.f32.mrf.mxu0
      %v411 = vadd.f32 %v318, %v410
      %v412 = vpop.f32.mrf.mxu0
      %413 = vmatprep.mubr.bf16.mxu0 0
      %414 = vmatmul.mubr.bf16.gmra.mxu0 %v343
      %v415 = vpop.f32.mrf.mxu0
      %v416 = vadd.f32 %v318, %v415
      %v417 = vpop.f32.mrf.mxu0
      %v418 = vpop.f32.mrf.mxu0
      %v419 = vadd.f32 %v318, %v418
      %v420 = vpop.f32.mrf.mxu0
      %421 = vmatprep.mubr.bf16.mxu0 0
      %422 = vmatmul.mubr.bf16.gmra.mxu0 %v346
      %v423 = vpop.f32.mrf.mxu0
      %v424 = vadd.f32 %v318, %v423
      %v425 = vpop.f32.mrf.mxu0
      %v426 = vpop.f32.mrf.mxu0
      %v427 = vadd.f32 %v318, %v426
      %v428 = vpop.f32.mrf.mxu0
      %429 = vmatprep.mubr.bf16.mxu0 0
      %430 = vmatmul.mubr.bf16.gmra.mxu0 %v349
      %v431 = vpop.f32.mrf.mxu0
      %v432 = vadd.f32 %v318, %v431
      %v433 = vpop.f32.mrf.mxu0
      %v434 = vpop.f32.mrf.mxu0
      %v435 = vadd.f32 %v318, %v434
      %v436 = vpop.f32.mrf.mxu0
      %437 = vmatprep.mubr.bf16.mxu0 0
      %438 = vmatmul.mubr.bf16.gmra.mxu0 %v352
      %v439 = vpop.f32.mrf.mxu0
      %v440 = vadd.f32 %v318, %v439
      %v441 = vpop.f32.mrf.mxu0
      %v442 = vpop.f32.mrf.mxu0
      %v443 = vadd.f32 %v318, %v442
      %v444 = vpop.f32.mrf.mxu0
      %445 = vmatprep.mubr.bf16.mxu0 0
      %446 = vmatmul.mubr.bf16.gmra.mxu0 %v355
      %v447 = vpop.f32.mrf.mxu0
      %v448 = vadd.f32 %v318, %v447
      %v449 = vpop.f32.mrf.mxu0
      %v450 = vpop.f32.mrf.mxu0
      %v451 = vadd.f32 %v318, %v450
      %v452 = vpop.f32.mrf.mxu0
      %453 = vdwg.mxu0
      %v454 = vmax.f32 %v392, 0.0
      %v455 = vmax.f32 %v395, 0.0
      %v456 = vmax.f32 %v400, 0.0
      %v457 = vmax.f32 %v403, 0.0
      %v458 = vmax.f32 %v408, 0.0
      %v459 = vmax.f32 %v411, 0.0
      %v460 = vmax.f32 %v416, 0.0
      %v461 = vmax.f32 %v419, 0.0
      %v462 = vmax.f32 %v424, 0.0
      %v463 = vmax.f32 %v427, 0.0
      %v464 = vmax.f32 %v432, 0.0
      %v465 = vmax.f32 %v435, 0.0
      %v466 = vmax.f32 %v440, 0.0
      %v467 = vmax.f32 %v443, 0.0
      %v468 = vmax.f32 %v448, 0.0
      %v469 = vmax.f32 %v451, 0.0
      %v470 = vpack.c.bf16 %v455, %v454
      %v471 = vpack.c.bf16 %v457, %v456
      %v472 = vpack.c.bf16 %v459, %v458
      %v473 = vpack.c.bf16 %v461, %v460
      %v474 = vpack.c.bf16 %v463, %v462
      %v475 = vpack.c.bf16 %v465, %v464
      %v476 = vpack.c.bf16 %v467, %v466
      %v477 = vpack.c.bf16 %v469, %v468
      %v478 = vld [vmem:[%s3] sm:$0xf]
      %v479 = vld [vmem:[%s3 + $0x4] sm:$0xf]
      %v480 = vld [vmem:[%s3 + $0x8] sm:$0xf]
      %v481 = vld [vmem:[%s3 + $0xc] sm:$0xf]
      %v482 = vld [vmem:[%s3 + $0x10] sm:$0xf]
      %v483 = vld [vmem:[%s3 + $0x14] sm:$0xf]
      %v484 = vld [vmem:[%s3 + $0x18] sm:$0xf]
      %v485 = vld [vmem:[%s3 + $0x1c] sm:$0xf]
      %v486 = vld [vmem:[%s3 + $0x20] sm:$0xf]
      %v487 = vld [vmem:[%s3 + $0x24] sm:$0xf]
      %v488 = vld [vmem:[%s3 + $0x28] sm:$0xf]
      %v489 = vld [vmem:[%s3 + $0x2c] sm:$0xf]
      %v490 = vld [vmem:[%s3 + $0x30] sm:$0xf]
      %v491 = vld [vmem:[%s3 + $0x34] sm:$0xf]
      %v492 = vld [vmem:[%s3 + $0x38] sm:$0xf]
      %v493 = vld [vmem:[%s3 + $0x3c] sm:$0xf]
      %v494 = vld [vmem:[%s4] sm:$0x1]
      %v496 = vlaneseq
      %v497 = vshrl.u32 %v496, 7
      %v498 = vsub.s32 0, %v497
      %v499 = vrot.slane %v494, %v498
      %v517 = vunpack.c.l.b16 %v478
      %v518 = vunpack.c.l.b16 %v479
      %v519 = vunpack.c.l.b16 %v480
      %v520 = vunpack.c.l.b16 %v481
      %v521 = vunpack.c.l.b16 %v482
      %v522 = vunpack.c.l.b16 %v483
      %v523 = vunpack.c.l.b16 %v484
      %v524 = vunpack.c.l.b16 %v485
      %v525 = vunpack.c.l.b16 %v486
      %v526 = vunpack.c.l.b16 %v487
      %v527 = vunpack.c.l.b16 %v488
      %v528 = vunpack.c.l.b16 %v489
      %v529 = vunpack.c.l.b16 %v490
      %v530 = vunpack.c.l.b16 %v491
      %v531 = vunpack.c.l.b16 %v492
      %v532 = vunpack.c.l.b16 %v493
      %v533 = vpack.c.b16 %v518, %v517
      %v534 = vpack.c.b16 %v520, %v519
      %v535 = vpack.c.b16 %v522, %v521
      %v536 = vpack.c.b16 %v524, %v523
      %v537 = vpack.c.b16 %v526, %v525
      %v538 = vpack.c.b16 %v528, %v527
      %v539 = vpack.c.b16 %v530, %v529
      %v540 = vpack.c.b16 %v532, %v531
      %549 = vmatprep.subr.bf16.mxu0 0
      %550 = vmatpush1.bf16.msra.mxu0 %v540
      %551 = vmatprep.subr.bf16.mxu0 0
      %552 = vmatpush1.bf16.msra.mxu0 %v539
      %553 = vmatprep.subr.bf16.mxu0 0
      %554 = vmatpush1.bf16.msra.mxu0 %v538
      %555 = vmatprep.subr.bf16.mxu0 0
      %556 = vmatpush1.bf16.msra.mxu0 %v537
      %557 = vmatprep.subr.bf16.mxu0 0
      %558 = vmatpush1.bf16.msra.mxu0 %v536
      %559 = vmatprep.subr.bf16.mxu0 0
      %560 = vmatpush1.bf16.msra.mxu0 %v535
      %561 = vmatprep.subr.bf16.mxu0 0
      %562 = vmatpush1.bf16.msra.mxu0 %v534
      %563 = vmatprep.subr.bf16.mxu0 0
      %564 = vmatpush1.bf16.msra.mxu0 %v533
      %565 = vmatprep.subr.bf16.mxu0 0
      %566 = vmatpush2.bf16.msra.mxu0 0
      %567 = vmatprep.subr.bf16.mxu0 0
      %568 = vmatpush2.bf16.msra.mxu0 0
      %569 = vmatprep.subr.bf16.mxu0 0
      %570 = vmatpush2.bf16.msra.mxu0 0
      %571 = vmatprep.subr.bf16.mxu0 0
      %572 = vmatpush2.bf16.msra.mxu0 0
      %573 = vmatprep.subr.bf16.mxu0 0
      %574 = vmatpush2.bf16.msra.mxu0 0
      %575 = vmatprep.subr.bf16.mxu0 0
      %576 = vmatpush2.bf16.msra.mxu0 0
      %577 = vmatprep.subr.bf16.mxu0 0
      %578 = vmatpush2.bf16.msra.mxu0 0
      %579 = vmatprep.subr.bf16.mxu0 0
      %580 = vmatpush2.bf16.msra.mxu0 0
      %581 = vmatprep.mubr.bf16.mxu0 0
      %582 = vmatmul.mubr.bf16.gmra.mxu0 %v470
      %v583 = vpop.f32.mrf.mxu0
      %v584 = vadd.f32 %v499, %v583
      %v585 = vpop.f32.mrf.mxu0
      %v586 = vpop.f32.mrf.mxu0
      %v587 = vadd.f32 %v499, %v586
      %v588 = vpop.f32.mrf.mxu0
      %589 = vmatprep.mubr.bf16.mxu0 0
      %590 = vmatmul.mubr.bf16.gmra.mxu0 %v471
      %v591 = vpop.f32.mrf.mxu0
      %v592 = vadd.f32 %v499, %v591
      %v593 = vpop.f32.mrf.mxu0
      %v594 = vpop.f32.mrf.mxu0
      %v595 = vadd.f32 %v499, %v594
      %v596 = vpop.f32.mrf.mxu0
      %597 = vmatprep.mubr.bf16.mxu0 0
      %598 = vmatmul.mubr.bf16.gmra.mxu0 %v472
      %v599 = vpop.f32.mrf.mxu0
      %v600 = vadd.f32 %v499, %v599
      %v601 = vpop.f32.mrf.mxu0
      %v602 = vpop.f32.mrf.mxu0
      %v603 = vadd.f32 %v499, %v602
      %v604 = vpop.f32.mrf.mxu0
      %605 = vmatprep.mubr.bf16.mxu0 0
      %606 = vmatmul.mubr.bf16.gmra.mxu0 %v473
      %v607 = vpop.f32.mrf.mxu0
      %v608 = vadd.f32 %v499, %v607
      %v609 = vpop.f32.mrf.mxu0
      %v610 = vpop.f32.mrf.mxu0
      %v611 = vadd.f32 %v499, %v610
      %v612 = vpop.f32.mrf.mxu0
      %613 = vmatprep.mubr.bf16.mxu0 0
      %614 = vmatmul.mubr.bf16.gmra.mxu0 %v474
      %v615 = vpop.f32.mrf.mxu0
      %v616 = vadd.f32 %v499, %v615
      %v617 = vpop.f32.mrf.mxu0
      %v618 = vpop.f32.mrf.mxu0
      %v619 = vadd.f32 %v499, %v618
      %v620 = vpop.f32.mrf.mxu0
      %621 = vmatprep.mubr.bf16.mxu0 0
      %622 = vmatmul.mubr.bf16.gmra.mxu0 %v475
      %v623 = vpop.f32.mrf.mxu0
      %v624 = vadd.f32 %v499, %v623
      %v625 = vpop.f32.mrf.mxu0
      %v626 = vpop.f32.mrf.mxu0
      %v627 = vadd.f32 %v499, %v626
      %v628 = vpop.f32.mrf.mxu0
      %629 = vmatprep.mubr.bf16.mxu0 0
      %630 = vmatmul.mubr.bf16.gmra.mxu0 %v476
      %v631 = vpop.f32.mrf.mxu0
      %v632 = vadd.f32 %v499, %v631
      %v633 = vpop.f32.mrf.mxu0
      %v634 = vpop.f32.mrf.mxu0
      %v635 = vadd.f32 %v499, %v634
      %v636 = vpop.f32.mrf.mxu0
      %637 = vmatprep.mubr.bf16.mxu0 0
      %638 = vmatmul.mubr.bf16.gmra.mxu0 %v477
      %v639 = vpop.f32.mrf.mxu0
      %v640 = vadd.f32 %v499, %v639
      %v641 = vpop.f32.mrf.mxu0
      %v642 = vpop.f32.mrf.mxu0
      %v643 = vadd.f32 %v499, %v642
      %v644 = vpop.f32.mrf.mxu0
      %645 = vdwg.mxu0
      %v646 = vmax.f32 %v584, 0.0
      %v647 = vmax.f32 %v587, 0.0
      %v648 = vmax.f32 %v592, 0.0
      %v649 = vmax.f32 %v595, 0.0
      %v650 = vmax.f32 %v600, 0.0
      %v651 = vmax.f32 %v603, 0.0
      %v652 = vmax.f32 %v608, 0.0
      %v653 = vmax.f32 %v611, 0.0
      %v654 = vmax.f32 %v616, 0.0
      %v655 = vmax.f32 %v619, 0.0
      %v656 = vmax.f32 %v624, 0.0
      %v657 = vmax.f32 %v627, 0.0
      %v658 = vmax.f32 %v632, 0.0
      %v659 = vmax.f32 %v635, 0.0
      %v660 = vmax.f32 %v640, 0.0
      %v661 = vmax.f32 %v643, 0.0
      %v662 = vld [vmem:[%s5] sm:$0x1]
      %v664 = vlaneseq
      %v665 = vshrl.u32 %v664, 7
      %v666 = vsub.s32 0, %v665
      %v667 = vrot.slane %v662, %v666
      %v669 = vmul.f32 %v646, %v667
      %v670 = vmul.f32 %v647, %v667
      %v671 = vmul.f32 %v648, %v667
      %v672 = vmul.f32 %v649, %v667
      %v673 = vmul.f32 %v650, %v667
      %v674 = vmul.f32 %v651, %v667
      %v675 = vmul.f32 %v652, %v667
      %v676 = vmul.f32 %v653, %v667
      %v677 = vmul.f32 %v654, %v667
      %v678 = vmul.f32 %v655, %v667
      %v679 = vmul.f32 %v656, %v667
      %v680 = vmul.f32 %v657, %v667
      %v681 = vmul.f32 %v658, %v667
      %v682 = vmul.f32 %v659, %v667
      %v683 = vmul.f32 %v660, %v667
      %v684 = vmul.f32 %v661, %v667
      %685 = vadd.xlane.f32.xlu0 %v669
      %v686 = vpop.xlane.xlu0 %685
      %687 = vadd.xlane.f32.xlu0 %v670
      %v688 = vpop.xlane.xlu0 %687
      %689 = vadd.xlane.f32.xlu0 %v671
      %v690 = vpop.xlane.xlu0 %689
      %691 = vadd.xlane.f32.xlu0 %v672
      %v692 = vpop.xlane.xlu0 %691
      %693 = vadd.xlane.f32.xlu0 %v673
      %v694 = vpop.xlane.xlu0 %693
      %695 = vadd.xlane.f32.xlu0 %v674
      %v696 = vpop.xlane.xlu0 %695
      %697 = vadd.xlane.f32.xlu0 %v675
      %v698 = vpop.xlane.xlu0 %697
      %699 = vadd.xlane.f32.xlu0 %v676
      %v700 = vpop.xlane.xlu0 %699
      %701 = vadd.xlane.f32.xlu0 %v677
      %v702 = vpop.xlane.xlu0 %701
      %703 = vadd.xlane.f32.xlu0 %v678
      %v704 = vpop.xlane.xlu0 %703
      %705 = vadd.xlane.f32.xlu0 %v679
      %v706 = vpop.xlane.xlu0 %705
      %707 = vadd.xlane.f32.xlu0 %v680
      %v708 = vpop.xlane.xlu0 %707
      %709 = vadd.xlane.f32.xlu0 %v681
      %v710 = vpop.xlane.xlu0 %709
      %711 = vadd.xlane.f32.xlu0 %v682
      %v712 = vpop.xlane.xlu0 %711
      %713 = vadd.xlane.f32.xlu0 %v683
      %v714 = vpop.xlane.xlu0 %713
      %715 = vadd.xlane.f32.xlu0 %v684
      %v716 = vpop.xlane.xlu0 %715
      %v717 = vld [vmem:[#allocation2] sm:$0x1]
      %v719 = vlaneseq
      %v720 = vshrl.u32 %v719, 7
      %v721 = vsub.s32 0, %v720
      %v722 = vrot.slane %v717, %v721
      %v724 = vadd.f32 %v686, %v722
      %v725 = vadd.f32 %v688, %v722
      %v726 = vadd.f32 %v690, %v722
      %v727 = vadd.f32 %v692, %v722
      %v728 = vadd.f32 %v694, %v722
      %v729 = vadd.f32 %v696, %v722
      %v730 = vadd.f32 %v698, %v722
      %v731 = vadd.f32 %v700, %v722
      %v732 = vadd.f32 %v702, %v722
      %v733 = vadd.f32 %v704, %v722
      %v734 = vadd.f32 %v706, %v722
      %v735 = vadd.f32 %v708, %v722
      %v736 = vadd.f32 %v710, %v722
      %v737 = vadd.f32 %v712, %v722
      %v738 = vadd.f32 %v714, %v722
      %v739 = vadd.f32 %v716, %v722
      %vm740 = vcmask 7168
      %741 = vst.msk [vmem:[%s282] sm:$0xff] %vm740, %v724
      %742 = vst.msk [vmem:[%s282 + $0x8] sm:$0xff] %vm740, %v725
      %743 = vst.msk [vmem:[%s282 + $0x10] sm:$0xff] %vm740, %v726
      %744 = vst.msk [vmem:[%s282 + $0x18] sm:$0xff] %vm740, %v727
      %745 = vst.msk [vmem:[%s282 + $0x20] sm:$0xff] %vm740, %v728
      %746 = vst.msk [vmem:[%s282 + $0x28] sm:$0xff] %vm740, %v729
      %747 = vst.msk [vmem:[%s282 + $0x30] sm:$0xff] %vm740, %v730
      %748 = vst.msk [vmem:[%s282 + $0x38] sm:$0xff] %vm740, %v731
      %749 = vst.msk [vmem:[%s282 + $0x40] sm:$0xff] %vm740, %v732
      %750 = vst.msk [vmem:[%s282 + $0x48] sm:$0xff] %vm740, %v733
      %751 = vst.msk [vmem:[%s282 + $0x50] sm:$0xff] %vm740, %v734
      %752 = vst.msk [vmem:[%s282 + $0x58] sm:$0xff] %vm740, %v735
      %753 = vst.msk [vmem:[%s282 + $0x60] sm:$0xff] %vm740, %v736
      %754 = vst.msk [vmem:[%s282 + $0x68] sm:$0xff] %vm740, %v737
      %755 = vst.msk [vmem:[%s282 + $0x70] sm:$0xff] %vm740, %v738
      %756 = vst.msk [vmem:[%s282 + $0x78] sm:$0xff] %vm740, %v739
      %s757 = smul.u32 16, %s20
      %p758 = scmp.lt.s32.totalorder %s757, 31
      %s759 = scalar_select %p758, %s757, 31
      %s760 = smul.addr %s759, 8
      %s761 = scalar_lea.vmem %s7, %s760
      // Predicated region
      $region49: #{tpu_custom_call.1} parent=47 // pred_check
        %p762 = pneg %p190
      $region50: #{tpu_custom_call.1} parent=47 // pred_check_branch
        %764 = sbr.rel (%p762) target = $region52
      $region51: #{tpu_custom_call.1} parent=47 // pred_region
        %s765 = smul.u32 16, %s20
      $region52: #{tpu_custom_call.1} parent=47 // pred_fallthru
        _
    $region48: #{tpu_custom_call.1} parent=5 // pred_fallthru
      _
    %p766 = scmp.le.s32.totalorder 2, %s15
    // Predicated region
    $region53: #{tpu_custom_call.1} parent=5 // pred_check
      %p767 = pneg %p766
    $region54: #{tpu_custom_call.1} parent=5 // pred_check_branch
      %769 = sbr.rel (%p767) target = $region56
    $region55: #{tpu_custom_call.1} parent=5 // pred_region
      %s770 = ssub.s32 %s15, 2
      // Predicated region
      $region57: #{tpu_custom_call.1} parent=55 // pred_check
        %p771 = pneg %p196
      $region58: #{tpu_custom_call.1} parent=55 // pred_check_branch
        %773 = sbr.rel (%p771) target = $region60
      $region59: #{tpu_custom_call.1} parent=55 // pred_region
        %s774 = smul.u32 16, %s21
        %p775 = scmp.lt.s32.totalorder %s774, 31
        %s776 = scalar_select %p775, %s774, 31
        %s777 = smul.addr %s776, 8
        %s778 = scalar_lea.vmem %s7, %s777
      $region60: #{tpu_custom_call.1} parent=55 // pred_fallthru
        _
    $region56: #{tpu_custom_call.1} parent=5 // pred_fallthru
      _
  $region6: #{tpu_custom_call.1} parent=0 // loop_footer
    %s19 = sadd.s32 1, %s15
  $region7: #{tpu_custom_call.1} parent=0 // loop_footer_branch
    %14 = sbr.rel target = $region3
  $region8: #{tpu_custom_call.1} parent=0 // loop_exit
    _

</llo_original>
